<compile_context>
chip_gen: v6e
topology: v6e:2x2x1
jax: 0.10.0
libtpu: 0.0.40
codegen_flags: <defaults>
</compile_context>

<pallas_src>
import functools

import jax
import jax.numpy as jnp
from jax.experimental import pallas as pl
from jax.experimental.pallas import tpu as pltpu  # noqa: F401  (TPU backend)


# ----------------------------- config (small) ------------------------------
B = 2               # batch
S = 8               # seq length
H = 32              # hidden_size
VOCAB = 64          # vocab_size
MAX_POS = 16        # max_position_embeddings  (>= S)
MAX_2D = 64         # max_2d_position_embeddings
TYPE_VOCAB = 2      # type_vocab_size
LN_EPS = 1e-12      # layer_norm_eps

# Row offsets of each sub-table inside the concatenated embedding table.
OFF_WORD = 0
OFF_POS = OFF_WORD + VOCAB          # 64
OFF_X = OFF_POS + MAX_POS           # 80   (left / right share this table)
OFF_Y = OFF_X + MAX_2D              # 144  (upper / lower share this table)
OFF_H = OFF_Y + MAX_2D              # 208
OFF_W = OFF_H + MAX_2D              # 272
OFF_TOK = OFF_W + MAX_2D            # 336
K_TOTAL = OFF_TOK + TYPE_VOCAB      # 338
TOK_BLOCK = max(8, ((TYPE_VOCAB + 7) // 8) * 8)   # tok block padded to >= 8 rows
K_PAD = OFF_TOK + TOK_BLOCK         # 344 (rows 338..343 are zero padding)


# --------------------------------- kernel ----------------------------------
def _layoutlm_embeddings_kernel(*refs, seq_len, batch, has_pos_tok):
    if has_pos_tok:
        wid_ref, box_ref, pt_ref, table_ref, gamma_ref, beta_ref, out_ref = refs
    else:
        wid_ref, box_ref, table_ref, gamma_ref, beta_ref, out_ref = refs
        pt_ref = None

    n = out_ref.shape[0]
    f32 = jnp.float32

    # One lane-iota per distinct sub-table width, shared across compares
    # (VOCAB == MAX_2D here, so a single (N, 64) iota serves 7 compares).
    iotas = {}

    def lane_iota(width):
        if width not in iotas:
            iotas[width] = jax.lax.broadcasted_iota(jnp.int32, (n, width), 1)
        return iotas[width]

    def block_lookup(id_cols, offset, width):
        """Sum-of-one-hot lookup restricted to one sub-table's `width` rows.

        Out-of-range ids (including negative h/w) match nothing and contribute
        a zero embedding; there is no aliasing into neighboring sub-tables.
        """
        it = lane_iota(width)
        hot = (id_cols[0] == it).astype(f32)
        for col in id_cols[1:]:
            hot = hot + (col == it).astype(f32)
        return jnp.dot(hot, table_ref[offset:offset + width, :],
                       preferred_element_type=f32)

    wid = wid_ref[...]                       # (N, 1) int32, sublane-oriented
    box = box_ref[...]                       # (N, 4) int32
    left = box[:, 0:1]
    upper = box[:, 1:2]
    right = box[:, 2:3]
    lower = box[:, 3:4]

    emb = block_lookup([wid], OFF_WORD, VOCAB)
    emb = emb + block_lookup([left, right], OFF_X, MAX_2D)
    emb = emb + block_lookup([upper, lower], OFF_Y, MAX_2D)
    emb = emb + block_lookup([lower - upper], OFF_H, MAX_2D)
    emb = emb + block_lookup([right - left], OFF_W, MAX_2D)

    if has_pos_tok:
        pt = pt_ref[...]                     # (N, 2) int32: [position, token_type]
        emb = emb + block_lookup([pt[:, 0:1]], OFF_POS, MAX_POS)
        emb = emb + block_lookup([pt[:, 1:2]], OFF_TOK, TOK_BLOCK)
    else:
        # Default position_ids == arange(seq_len) per batch row: add the first
        # seq_len position rows directly, tiled over the batch (no compares).
        pos_rows = table_ref[OFF_POS:OFF_POS + seq_len, :]        # (S, H)
        emb = emb + jnp.concatenate([pos_rows] * batch, axis=0)   # (N, H)
        # Default token_type_ids == 0: broadcast-add token-type row 0.
        emb = emb + table_ref[OFF_TOK:OFF_TOK + 1, :]

    # Fused LayerNorm: two-pass variance (numerically safe), rsqrt on the EUP.
    inv_h = f32(1.0 / emb.shape[-1])
    mean = jnp.sum(emb, axis=-1, keepdims=True) * inv_h
    centered = emb - mean
    var = jnp.sum(centered * centered, axis=-1, keepdims=True) * inv_h
    normed = centered * jax.lax.rsqrt(var + f32(LN_EPS))

    # Dropout: identity in eval mode.
    out_ref[...] = (normed * gamma_ref[...] + beta_ref[...]).astype(out_ref.dtype)


# -------------------------------- wrapper -----------------------------------
def layoutlm_embeddings(input_ids, bbox, params,
                        token_type_ids=None, position_ids=None):
    """Mirrors LayoutLMEmbeddings.forward (eval mode)."""
    b, s = input_ids.shape
    n = b * s

    # Sublane-oriented id columns: rows land on sublanes, one id kind per lane.
    wid = input_ids.reshape(n, 1).astype(jnp.int32)
    box = bbox.reshape(n, 4).astype(jnp.int32)

    has_pos_tok = (position_ids is not None) or (token_type_ids is not None)
    operands = [wid, box]
    if has_pos_tok:
        if position_ids is None:
            position_ids = jnp.broadcast_to(jnp.arange(s, dtype=jnp.int32), (b, s))
        if token_type_ids is None:
            token_type_ids = jnp.zeros_like(input_ids)
        pt = jnp.stack([position_ids.reshape(n), token_type_ids.reshape(n)],
                       axis=1).astype(jnp.int32)
        operands.append(pt)

    table = params["table"]                  # (K_PAD, H): concatenated at init
    gamma = params["ln_gamma"]               # (1, H)
    beta = params["ln_beta"]                 # (1, H)

    k_active = VOCAB + 4 * MAX_2D + (MAX_POS + TOK_BLOCK if has_pos_tok else 0)
    cost = pl.CostEstimate(
        flops=2 * n * k_active * H,
        transcendentals=n,
        bytes_accessed=(table.size + wid.size + box.size + n * H + 2 * H) * 4,
    )

    kernel = functools.partial(_layoutlm_embeddings_kernel,
                               seq_len=s, batch=b, has_pos_tok=has_pos_tok)

    # Gridless single invocation: all operands are tiny and live in VMEM; the
    # output is one contiguous (N, H) slab.  (At larger N, add a "parallel"
    # row grid so v7x's two TensorCores are both used.)
    out = pl.pallas_call(
        kernel,
        out_shape=jax.ShapeDtypeStruct((n, H), jnp.float32),
        cost_estimate=cost,
    )(*operands, table, gamma, beta)
    return out.reshape(b, s, H)


# --------------------------- params & reference -----------------------------
def init_params(key):
    ks = jax.random.split(key, 7)
    scale = 0.02
    word = scale * jax.random.normal(ks[0], (VOCAB, H), jnp.float32)
    word = word.at[0].set(0.0)  # padding_idx=0 zero row
    params = {
        "word": word,
        "pos": scale * jax.random.normal(ks[1], (MAX_POS, H), jnp.float32),
        "x": scale * jax.random.normal(ks[2], (MAX_2D, H), jnp.float32),
        "y": scale * jax.random.normal(ks[3], (MAX_2D, H), jnp.float32),
        "h": scale * jax.random.normal(ks[4], (MAX_2D, H), jnp.float32),
        "w": scale * jax.random.normal(ks[5], (MAX_2D, H), jnp.float32),
        "tok": scale * jax.random.normal(ks[6], (TYPE_VOCAB, H), jnp.float32),
        "ln_gamma": jnp.ones((1, H), jnp.float32),
        "ln_beta": jnp.zeros((1, H), jnp.float32),
    }
    # Concatenated, zero-padded embedding table: built ONCE here and cached as
    # a parameter (the per-call wrapper no longer concats / re-streams it).
    params["table"] = jnp.concatenate([
        params["word"], params["pos"], params["x"], params["y"],
        params["h"], params["w"], params["tok"],
        jnp.zeros((K_PAD - K_TOTAL, H), jnp.float32),
    ], axis=0)
    return params


def layoutlm_embeddings_ref(input_ids, bbox, params,
                            token_type_ids=None, position_ids=None):
    """Pure-JAX reference (mirrors the PyTorch module)."""
    b, s = input_ids.shape
    if position_ids is None:
        position_ids = jnp.broadcast_to(jnp.arange(s, dtype=jnp.int32), (b, s))
    if token_type_ids is None:
        token_type_ids = jnp.zeros_like(input_ids)
    take = lambda tbl, idx: jnp.take(tbl, idx, axis=0)
    emb = (take(params["word"], input_ids)
           + take(params["pos"], position_ids)
           + take(params["x"], bbox[:, :, 0])
           + take(params["y"], bbox[:, :, 1])
           + take(params["x"], bbox[:, :, 2])
           + take(params["y"], bbox[:, :, 3])
           + take(params["h"], bbox[:, :, 3] - bbox[:, :, 1])
           + take(params["w"], bbox[:, :, 2] - bbox[:, :, 0])
           + take(params["tok"], token_type_ids))
    mean = jnp.mean(emb, axis=-1, keepdims=True)
    var = jnp.mean((emb - mean) ** 2, axis=-1, keepdims=True)
    out = (emb - mean) * jax.lax.rsqrt(var + LN_EPS)
    return out * params["ln_gamma"] + params["ln_beta"]


# ----------------------------------- main ------------------------------------
if __name__ == "__main__":
    key = jax.random.PRNGKey(0)
    kp, ki, kb0, kb1, kdw, kdh, ktt = jax.random.split(key, 7)

    params = init_params(kp)

    input_ids = jax.random.randint(ki, (B, S), 1, VOCAB, dtype=jnp.int32)
    x0 = jax.random.randint(kb0, (B, S), 0, 32, dtype=jnp.int32)
    y0 = jax.random.randint(kb1, (B, S), 0, 32, dtype=jnp.int32)
    dw = jax.random.randint(kdw, (B, S), 0, 32, dtype=jnp.int32)
    dh = jax.random.randint(kdh, (B, S), 0, 32, dtype=jnp.int32)
    bbox = jnp.stack([x0, y0, x0 + dw, y0 + dh], axis=-1)      # (B, S, 4)

    # Default-args path (position_ids = arange, token_type_ids = zeros).
    fwd = jax.jit(layoutlm_embeddings)
    out = fwd(input_ids, bbox, params)
    jax.block_until_ready(out)
    assert out.shape == (B, S, H) and out.dtype == jnp.float32

    ref = layoutlm_embeddings_ref(input_ids, bbox, params)
    max_err = float(jnp.max(jnp.abs(out - ref)))
    assert jnp.allclose(out, ref, rtol=1e-4, atol=1e-4), max_err

    # Explicit position_ids / token_type_ids path.
    token_type_ids = jax.random.randint(ktt, (B, S), 0, TYPE_VOCAB, dtype=jnp.int32)
    position_ids = jnp.broadcast_to(jnp.arange(S, dtype=jnp.int32), (B, S))
    out2 = layoutlm_embeddings(input_ids, bbox, params,
                               token_type_ids=token_type_ids,
                               position_ids=position_ids)
    jax.block_until_ready(out2)
    ref2 = layoutlm_embeddings_ref(input_ids, bbox, params,
                                   token_type_ids=token_type_ids,
                                   position_ids=position_ids)
    max_err2 = float(jnp.max(jnp.abs(out2 - ref2)))
    assert jnp.allclose(out2, ref2, rtol=1e-4, atol=1e-4), max_err2

    print("KERNEL_OK")
</pallas_src>

<mosaic_0001>
module attributes {stable_mosaic.version = 11 : i64} {
  func.func @_layoutlm_embeddings_kernel(%arg0: memref<16x1xi32, #tpu.memory_space<vmem>>, %arg1: memref<16x4xi32, #tpu.memory_space<vmem>>, %arg2: memref<344x32xf32, #tpu.memory_space<vmem>>, %arg3: memref<1x32xf32, #tpu.memory_space<vmem>>, %arg4: memref<1x32xf32, #tpu.memory_space<vmem>>, %arg5: memref<16x32xf32, #tpu.memory_space<vmem>>) attributes {dimension_semantics = [], scalar_prefetch = 0 : i64, scratch_operands = 0 : i64, tpu.core_type = #tpu.core_type<tc>} {
    %c0 = arith.constant 0 : index
    %c0_0 = arith.constant 0 : index
    %0 = vector.load %arg0[%c0, %c0_0] : memref<16x1xi32, #tpu.memory_space<vmem>>, vector<16x1xi32>
    %c0_1 = arith.constant 0 : index
    %c0_2 = arith.constant 0 : index
    %1 = vector.load %arg1[%c0_1, %c0_2] : memref<16x4xi32, #tpu.memory_space<vmem>>, vector<16x4xi32>
    %2 = vector.extract_strided_slice %1 {offsets = [0, 0], sizes = [16, 1], strides = [1, 1]} : vector<16x4xi32> to vector<16x1xi32>
    %3 = vector.extract_strided_slice %1 {offsets = [0, 1], sizes = [16, 1], strides = [1, 1]} : vector<16x4xi32> to vector<16x1xi32>
    %4 = vector.extract_strided_slice %1 {offsets = [0, 2], sizes = [16, 1], strides = [1, 1]} : vector<16x4xi32> to vector<16x1xi32>
    %5 = vector.extract_strided_slice %1 {offsets = [0, 3], sizes = [16, 1], strides = [1, 1]} : vector<16x4xi32> to vector<16x1xi32>
    %6 = tpu.iota {dimensions = array<i32: 1>} : vector<16x64xi32>
    %7 = vector.broadcast %0 : vector<16x1xi32> to vector<16x64xi32>
    %8 = arith.cmpi eq, %7, %6 : vector<16x64xi32>
    %9 = arith.extui %8 : vector<16x64xi1> to vector<16x64xi32>
    %10 = arith.sitofp %9 : vector<16x64xi32> to vector<16x64xf32>
    %c0_3 = arith.constant 0 : index
    %c0_4 = arith.constant 0 : index
    %11 = vector.load %arg2[%c0_3, %c0_4] : memref<344x32xf32, #tpu.memory_space<vmem>>, vector<64x32xf32>
    %cst = arith.constant dense<0.000000e+00> : vector<16x32xf32>
    %12 = tpu.matmul %10, %11, %cst {dimension_numbers = #tpu.dot_dimension_numbers<[1], [0], [0], [1], [0, 0, 1, 1], [], []>} : vector<16x64xf32>, vector<64x32xf32>, vector<16x32xf32> -> vector<16x32xf32>
    %13 = vector.broadcast %2 : vector<16x1xi32> to vector<16x64xi32>
    %14 = arith.cmpi eq, %13, %6 : vector<16x64xi32>
    %15 = arith.extui %14 : vector<16x64xi1> to vector<16x64xi32>
    %16 = arith.sitofp %15 : vector<16x64xi32> to vector<16x64xf32>
    %17 = vector.broadcast %4 : vector<16x1xi32> to vector<16x64xi32>
    %18 = arith.cmpi eq, %17, %6 : vector<16x64xi32>
    %19 = arith.extui %18 : vector<16x64xi1> to vector<16x64xi32>
    %20 = arith.sitofp %19 : vector<16x64xi32> to vector<16x64xf32>
    %21 = arith.addf %16, %20 : vector<16x64xf32>
    %c80 = arith.constant 80 : index
    %c0_5 = arith.constant 0 : index
    %22 = vector.load %arg2[%c80, %c0_5] : memref<344x32xf32, #tpu.memory_space<vmem>>, vector<64x32xf32>
    %cst_6 = arith.constant dense<0.000000e+00> : vector<16x32xf32>
    %23 = tpu.matmul %21, %22, %cst_6 {dimension_numbers = #tpu.dot_dimension_numbers<[1], [0], [0], [1], [0, 0, 1, 1], [], []>} : vector<16x64xf32>, vector<64x32xf32>, vector<16x32xf32> -> vector<16x32xf32>
    %24 = arith.addf %12, %23 : vector<16x32xf32>
    %25 = vector.broadcast %3 : vector<16x1xi32> to vector<16x64xi32>
    %26 = arith.cmpi eq, %25, %6 : vector<16x64xi32>
    %27 = arith.extui %26 : vector<16x64xi1> to vector<16x64xi32>
    %28 = arith.sitofp %27 : vector<16x64xi32> to vector<16x64xf32>
    %29 = vector.broadcast %5 : vector<16x1xi32> to vector<16x64xi32>
    %30 = arith.cmpi eq, %29, %6 : vector<16x64xi32>
    %31 = arith.extui %30 : vector<16x64xi1> to vector<16x64xi32>
    %32 = arith.sitofp %31 : vector<16x64xi32> to vector<16x64xf32>
    %33 = arith.addf %28, %32 : vector<16x64xf32>
    %c144 = arith.constant 144 : index
    %c0_7 = arith.constant 0 : index
    %34 = vector.load %arg2[%c144, %c0_7] : memref<344x32xf32, #tpu.memory_space<vmem>>, vector<64x32xf32>
    %cst_8 = arith.constant dense<0.000000e+00> : vector<16x32xf32>
    %35 = tpu.matmul %33, %34, %cst_8 {dimension_numbers = #tpu.dot_dimension_numbers<[1], [0], [0], [1], [0, 0, 1, 1], [], []>} : vector<16x64xf32>, vector<64x32xf32>, vector<16x32xf32> -> vector<16x32xf32>
    %36 = arith.addf %24, %35 : vector<16x32xf32>
    %37 = arith.subi %5, %3 : vector<16x1xi32>
    %38 = vector.broadcast %37 : vector<16x1xi32> to vector<16x64xi32>
    %39 = arith.cmpi eq, %38, %6 : vector<16x64xi32>
    %40 = arith.extui %39 : vector<16x64xi1> to vector<16x64xi32>
    %41 = arith.sitofp %40 : vector<16x64xi32> to vector<16x64xf32>
    %c208 = arith.constant 208 : index
    %c0_9 = arith.constant 0 : index
    %42 = vector.load %arg2[%c208, %c0_9] : memref<344x32xf32, #tpu.memory_space<vmem>>, vector<64x32xf32>
    %cst_10 = arith.constant dense<0.000000e+00> : vector<16x32xf32>
    %43 = tpu.matmul %41, %42, %cst_10 {dimension_numbers = #tpu.dot_dimension_numbers<[1], [0], [0], [1], [0, 0, 1, 1], [], []>} : vector<16x64xf32>, vector<64x32xf32>, vector<16x32xf32> -> vector<16x32xf32>
    %44 = arith.addf %36, %43 : vector<16x32xf32>
    %45 = arith.subi %4, %2 : vector<16x1xi32>
    %46 = vector.broadcast %45 : vector<16x1xi32> to vector<16x64xi32>
    %47 = arith.cmpi eq, %46, %6 : vector<16x64xi32>
    %48 = arith.extui %47 : vector<16x64xi1> to vector<16x64xi32>
    %49 = arith.sitofp %48 : vector<16x64xi32> to vector<16x64xf32>
    %c272 = arith.constant 272 : index
    %c0_11 = arith.constant 0 : index
    %50 = vector.load %arg2[%c272, %c0_11] : memref<344x32xf32, #tpu.memory_space<vmem>>, vector<64x32xf32>
    %cst_12 = arith.constant dense<0.000000e+00> : vector<16x32xf32>
    %51 = tpu.matmul %49, %50, %cst_12 {dimension_numbers = #tpu.dot_dimension_numbers<[1], [0], [0], [1], [0, 0, 1, 1], [], []>} : vector<16x64xf32>, vector<64x32xf32>, vector<16x32xf32> -> vector<16x32xf32>
    %52 = arith.addf %44, %51 : vector<16x32xf32>
    %c64 = arith.constant 64 : index
    %c0_13 = arith.constant 0 : index
    %53 = vector.load %arg2[%c64, %c0_13] : memref<344x32xf32, #tpu.memory_space<vmem>>, vector<8x32xf32>
    %54 = tpu.concatenate %53, %53 in 0 : vector<8x32xf32>, vector<8x32xf32> -> vector<16x32xf32>
    %55 = arith.addf %52, %54 : vector<16x32xf32>
    %c336 = arith.constant 336 : index
    %c0_14 = arith.constant 0 : index
    %56 = vector.load %arg2[%c336, %c0_14] : memref<344x32xf32, #tpu.memory_space<vmem>>, vector<1x32xf32>
    %57 = vector.broadcast %56 : vector<1x32xf32> to vector<16x32xf32>
    %58 = arith.addf %55, %57 : vector<16x32xf32>
    %cst_15 = arith.constant dense<0.000000e+00> : vector<16xf32>
    %59 = vector.multi_reduction <add>, %58, %cst_15 [1] : vector<16x32xf32> to vector<16xf32>
    %60 = vector.shape_cast %59 : vector<16xf32> to vector<16x1xf32>
    %cst_16 = arith.constant 3.125000e-02 : f32
    %61 = vector.broadcast %cst_16 : f32 to vector<16x1xf32>
    %62 = arith.mulf %60, %61 : vector<16x1xf32>
    %63 = vector.broadcast %62 : vector<16x1xf32> to vector<16x32xf32>
    %64 = arith.subf %58, %63 : vector<16x32xf32>
    %65 = arith.mulf %64, %64 : vector<16x32xf32>
    %cst_17 = arith.constant dense<0.000000e+00> : vector<16xf32>
    %66 = vector.multi_reduction <add>, %65, %cst_17 [1] : vector<16x32xf32> to vector<16xf32>
    %67 = vector.shape_cast %66 : vector<16xf32> to vector<16x1xf32>
    %cst_18 = arith.constant 3.125000e-02 : f32
    %68 = vector.broadcast %cst_18 : f32 to vector<16x1xf32>
    %69 = arith.mulf %67, %68 : vector<16x1xf32>
    %cst_19 = arith.constant 9.99999996E-13 : f32
    %70 = vector.broadcast %cst_19 : f32 to vector<16x1xf32>
    %71 = arith.addf %69, %70 : vector<16x1xf32>
    %72 = math.rsqrt %71 : vector<16x1xf32>
    %73 = vector.broadcast %72 : vector<16x1xf32> to vector<16x32xf32>
    %74 = arith.mulf %64, %73 : vector<16x32xf32>
    %c0_20 = arith.constant 0 : index
    %c0_21 = arith.constant 0 : index
    %75 = vector.load %arg3[%c0_20, %c0_21] : memref<1x32xf32, #tpu.memory_space<vmem>>, vector<1x32xf32>
    %76 = vector.broadcast %75 : vector<1x32xf32> to vector<16x32xf32>
    %77 = arith.mulf %74, %76 : vector<16x32xf32>
    %c0_22 = arith.constant 0 : index
    %c0_23 = arith.constant 0 : index
    %78 = vector.load %arg4[%c0_22, %c0_23] : memref<1x32xf32, #tpu.memory_space<vmem>>, vector<1x32xf32>
    %79 = vector.broadcast %78 : vector<1x32xf32> to vector<16x32xf32>
    %80 = arith.addf %77, %79 : vector<16x32xf32>
    %c0_24 = arith.constant 0 : index
    %c0_25 = arith.constant 0 : index
    %81 = vector.load %arg5[%c0_24, %c0_25] : memref<16x32xf32, #tpu.memory_space<vmem>>, vector<16x32xf32>
    tpu.vector_store %arg5[%c0_24, %c0_25], %80 {strides = array<i32>} : memref<16x32xf32, #tpu.memory_space<vmem>>, vector<16x32xf32>,
    return
  }
}

</mosaic_0001>

<llo_original>
// kernel: layoutlm_embeddings.1
$region0: #{layoutlm_embeddings.1}
  #allocation0 [shape = 'u32[]', space=smem, size = 0x4, offset = 0x4, fixed_abs, tag = 'smem constant byte address 0x4 - core index']
  #allocation1 [shape = 'u32[144,128]{1,0:T(1,128)}', space=vmem, size = 0x12000, scoped, tag = 'internal scratch']
  %s0 = inlined_call_operand.vmem [shape: s32[16,1], index: 0, kind: input, shape index: {}]
  %s1 = inlined_call_operand.vmem [shape: s32[16,4], index: 1, kind: input, shape index: {}]
  %s2 = inlined_call_operand.vmem [shape: f32[344,32], index: 2, kind: input, shape index: {}]
  %s3 = inlined_call_operand.vmem [shape: f32[1,32], index: 3, kind: input, shape index: {}]
  %s4 = inlined_call_operand.vmem [shape: f32[1,32], index: 4, kind: input, shape index: {}]
  %s5 = inlined_call_operand.hbm [shape: f32[16,32], index: 5, kind: output, shape index: {}]
  %s6 = sld [smem:[#allocation0]]
  $region30: #{layoutlm_embeddings.1} parent=0
    _
  %s8 = ssub.s32 1, %s6
  %s9 = scalar_select 0, %s8, %s6
  $region1: #{layoutlm_embeddings.1} parent=0
    #allocation2 [shape = 'u8[8192]{0}', space=vmem, size = 0x2000, scoped, tag = 'output window, operand 0, single buffered']
    #allocation3 [shape = 's32[1]{0}', space=sflag, size = 0x4, scoped, tag = 'scoped memory for layoutlm_embeddings.1']
    %10 = vsyncpa [#allocation3], 0
    // Predicated region
    $region2: #{layoutlm_embeddings.1} parent=1 // pred_check
      _
    $region3: #{layoutlm_embeddings.1} parent=1 // pred_check_branch
      %12 = sbr.rel (0) target = $region5
    $region4: #{layoutlm_embeddings.1} parent=1 // pred_region
      _
    $region5: #{layoutlm_embeddings.1} parent=1 // pred_fallthru
      _
    // Predicated region
    $region6: #{layoutlm_embeddings.1} parent=1 // pred_check
      _
    $region7: #{layoutlm_embeddings.1} parent=1 // pred_check_branch
      %14 = sbr.rel (0) target = $region9
    $region8: #{layoutlm_embeddings.1} parent=1 // pred_region
      _
    $region9: #{layoutlm_embeddings.1} parent=1 // pred_fallthru
      _
    // Predicated region
    $region10: #{layoutlm_embeddings.1} parent=1 // pred_check
      _
    $region11: #{layoutlm_embeddings.1} parent=1 // pred_check_branch
      %16 = sbr.rel (0) target = $region13
    $region12: #{layoutlm_embeddings.1} parent=1 // pred_region
      _
    $region13: #{layoutlm_embeddings.1} parent=1 // pred_fallthru
      _
    // Predicated region
    $region14: #{layoutlm_embeddings.1} parent=1 // pred_check
      _
    $region15: #{layoutlm_embeddings.1} parent=1 // pred_check_branch
      %18 = sbr.rel (0) target = $region17
    $region16: #{layoutlm_embeddings.1} parent=1 // pred_region
      _
    $region17: #{layoutlm_embeddings.1} parent=1 // pred_fallthru
      _
    // Predicated region
    $region18: #{layoutlm_embeddings.1} parent=1 // pred_check
      _
    $region19: #{layoutlm_embeddings.1} parent=1 // pred_check_branch
      %20 = sbr.rel (0) target = $region21
    $region20: #{layoutlm_embeddings.1} parent=1 // pred_region
      _
    $region21: #{layoutlm_embeddings.1} parent=1 // pred_fallthru
      _
    %v21 = vld [vmem:[%s0] sm:$0xff]
    %v22 = vld [vmem:[%s0 + $0x8] sm:$0xff]
    %v23 = vld [vmem:[%s1] sm:$0xff]
    %v24 = vld [vmem:[%s1 + $0x8] sm:$0xff]
    %v25 = vlaneseq
    %v26 = vand.u32 %v25, 127
    %27 = vset.pattern.permute.xlu0 0
    %28 = vperm.xlu0 %27, %v21
    %v29 = vpop.permute.xlu0 %28
    %30 = vset.pattern.permute.xlu0 0
    %31 = vperm.xlu0 %30, %v22
    %v32 = vpop.permute.xlu0 %31
    %vm33 = vcmp.eq.s32.totalorder %v29, %v26
    %vm34 = vcmp.eq.s32.totalorder %v32, %v26
    %v35 = vsel %vm33, 1, 0
    %v36 = vsel %vm34, 1, 0
    %v37 = vcvt.s32.f32 %v35
    %v38 = vcvt.s32.f32 %v36
    %v39 = vld [vmem:[%s2] sm:$0xff]
    %v40 = vld [vmem:[%s2 + $0x8] sm:$0xff]
    %v41 = vld [vmem:[%s2 + $0x10] sm:$0xff]
    %v42 = vld [vmem:[%s2 + $0x18] sm:$0xff]
    %v43 = vld [vmem:[%s2 + $0x20] sm:$0xff]
    %v44 = vld [vmem:[%s2 + $0x28] sm:$0xff]
    %v45 = vld [vmem:[%s2 + $0x30] sm:$0xff]
    %v46 = vld [vmem:[%s2 + $0x38] sm:$0xff]
    %47 = vset.pattern.permute.xlu0 0
    %48 = vperm.xlu0 %47, %v23
    %v49 = vpop.permute.xlu0 %48
    %50 = vset.pattern.permute.xlu0 0
    %51 = vperm.xlu0 %50, %v24
    %v52 = vpop.permute.xlu0 %51
    %vm53 = vcmp.eq.s32.totalorder %v49, %v26
    %vm54 = vcmp.eq.s32.totalorder %v52, %v26
    %v55 = vsel %vm53, 1, 0
    %v56 = vsel %vm54, 1, 0
    %v57 = vcvt.s32.f32 %v55
    %v58 = vcvt.s32.f32 %v56
    %59 = vset.pattern.permute.xlu0 2
    %60 = vperm.xlu0 %59, %v23
    %v61 = vpop.permute.xlu0 %60
    %62 = vset.pattern.permute.xlu0 2
    %63 = vperm.xlu0 %62, %v24
    %v64 = vpop.permute.xlu0 %63
    %vm65 = vcmp.eq.s32.totalorder %v61, %v26
    %vm66 = vcmp.eq.s32.totalorder %v64, %v26
    %v67 = vsel %vm65, 1, 0
    %v68 = vsel %vm66, 1, 0
    %v69 = vcvt.s32.f32 %v67
    %v70 = vcvt.s32.f32 %v68
    %v71 = vadd.f32 %v57, %v69
    %v72 = vadd.f32 %v58, %v70
    %v73 = vld [vmem:[%s2 + $0x50] sm:$0xff]
    %v74 = vld [vmem:[%s2 + $0x58] sm:$0xff]
    %v75 = vld [vmem:[%s2 + $0x60] sm:$0xff]
    %v76 = vld [vmem:[%s2 + $0x68] sm:$0xff]
    %v77 = vld [vmem:[%s2 + $0x70] sm:$0xff]
    %v78 = vld [vmem:[%s2 + $0x78] sm:$0xff]
    %v79 = vld [vmem:[%s2 + $0x80] sm:$0xff]
    %v80 = vld [vmem:[%s2 + $0x88] sm:$0xff]
    %vm81 = vcmask 523264
    %v83 = vsel %vm81, %v71, 0
    %v86 = vsel %vm81, %v72, 0
    %88 = vmatprep.subr.mxu0 0.0
    %89 = vmatpush1.msra.mxu0 0.0
    %90 = vmatprep.subr.mxu0 0.0
    %91 = vmatpush1.msra.mxu0 0.0
    %92 = vmatprep.subr.mxu0 0.0
    %93 = vmatpush1.msra.mxu0 0.0
    %94 = vmatprep.subr.mxu0 0.0
    %95 = vmatpush1.msra.mxu0 0.0
    %96 = vmatprep.subr.mxu0 0.0
    %97 = vmatpush1.msra.mxu0 0.0
    %98 = vmatprep.subr.mxu0 0.0
    %99 = vmatpush1.msra.mxu0 0.0
    %100 = vmatprep.subr.mxu0 0.0
    %101 = vmatpush1.msra.mxu0 0.0
    %102 = vmatprep.subr.mxu0 0.0
    %103 = vmatpush1.msra.mxu0 0.0
    %104 = vmatprep.subr.mxu0 0.0
    %105 = vmatpush1.msra.mxu0 %v80
    %106 = vmatprep.subr.mxu0 0.0
    %107 = vmatpush1.msra.mxu0 %v79
    %108 = vmatprep.subr.mxu0 0.0
    %109 = vmatpush1.msra.mxu0 %v78
    %110 = vmatprep.subr.mxu0 0.0
    %111 = vmatpush1.msra.mxu0 %v77
    %112 = vmatprep.subr.mxu0 0.0
    %113 = vmatpush1.msra.mxu0 %v76
    %114 = vmatprep.subr.mxu0 0.0
    %115 = vmatpush1.msra.mxu0 %v75
    %116 = vmatprep.subr.mxu0 0.0
    %117 = vmatpush1.msra.mxu0 %v74
    %118 = vmatprep.subr.mxu0 0.0
    %119 = vmatpush1.msra.mxu0 %v73
    %120 = vmatprep.subr.mxu0 0.0
    %121 = vmatpush2.msra.mxu0 0.0
    %122 = vmatprep.subr.mxu0 0.0
    %123 = vmatpush2.msra.mxu0 0.0
    %124 = vmatprep.subr.mxu0 0.0
    %125 = vmatpush2.msra.mxu0 0.0
    %126 = vmatprep.subr.mxu0 0.0
    %127 = vmatpush2.msra.mxu0 0.0
    %128 = vmatprep.subr.mxu0 0.0
    %129 = vmatpush2.msra.mxu0 0.0
    %130 = vmatprep.subr.mxu0 0.0
    %131 = vmatpush2.msra.mxu0 0.0
    %132 = vmatprep.subr.mxu0 0.0
    %133 = vmatpush2.msra.mxu0 0.0
    %134 = vmatprep.subr.mxu0 0.0
    %135 = vmatpush2.msra.mxu0 0.0
    %136 = vmatprep.subr.mxu0 0.0
    %137 = vmatpush2.msra.mxu0 0.0
    %138 = vmatprep.subr.mxu0 0.0
    %139 = vmatpush2.msra.mxu0 0.0
    %140 = vmatprep.subr.mxu0 0.0
    %141 = vmatpush2.msra.mxu0 0.0
    %142 = vmatprep.subr.mxu0 0.0
    %143 = vmatpush2.msra.mxu0 0.0
    %144 = vmatprep.subr.mxu0 0.0
    %145 = vmatpush2.msra.mxu0 0.0
    %146 = vmatprep.subr.mxu0 0.0
    %147 = vmatpush2.msra.mxu0 0.0
    %148 = vmatprep.subr.mxu0 0.0
    %149 = vmatpush2.msra.mxu0 0.0
    %150 = vmatprep.subr.mxu0 0.0
    %151 = vmatpush2.msra.mxu0 0.0
    %152 = vmatprep.mubr.f32.mxu0 0.0
    %153 = vmatmul.mubr.f32.gmra.mxu0 %v83
    %v154 = vpop.f32.mrf.mxu0
    %v155 = vadd.f32 0.0, %v154
    %v156 = vpop.f32.mrf.mxu0
    %157 = vmatprep.mubr.f32.mxu0 0.0
    %158 = vmatmul.mubr.f32.gmra.mxu0 %v86
    %v159 = vpop.f32.mrf.mxu0
    %v160 = vadd.f32 0.0, %v159
    %v161 = vpop.f32.mrf.mxu0
    %162 = vdwg.mxu0
    %v164 = vsel %vm81, %v37, 0
    %v167 = vsel %vm81, %v38, 0
    %169 = vmatprep.subr.mxu0 0.0
    %170 = vmatpush1.msra.mxu0 0.0
    %171 = vmatprep.subr.mxu0 0.0
    %172 = vmatpush1.msra.mxu0 0.0
    %173 = vmatprep.subr.mxu0 0.0
    %174 = vmatpush1.msra.mxu0 0.0
    %175 = vmatprep.subr.mxu0 0.0
    %176 = vmatpush1.msra.mxu0 0.0
    %177 = vmatprep.subr.mxu0 0.0
    %178 = vmatpush1.msra.mxu0 0.0
    %179 = vmatprep.subr.mxu0 0.0
    %180 = vmatpush1.msra.mxu0 0.0
    %181 = vmatprep.subr.mxu0 0.0
    %182 = vmatpush1.msra.mxu0 0.0
    %183 = vmatprep.subr.mxu0 0.0
    %184 = vmatpush1.msra.mxu0 0.0
    %185 = vmatprep.subr.mxu0 0.0
    %186 = vmatpush1.msra.mxu0 %v46
    %187 = vmatprep.subr.mxu0 0.0
    %188 = vmatpush1.msra.mxu0 %v45
    %189 = vmatprep.subr.mxu0 0.0
    %190 = vmatpush1.msra.mxu0 %v44
    %191 = vmatprep.subr.mxu0 0.0
    %192 = vmatpush1.msra.mxu0 %v43
    %193 = vmatprep.subr.mxu0 0.0
    %194 = vmatpush1.msra.mxu0 %v42
    %195 = vmatprep.subr.mxu0 0.0
    %196 = vmatpush1.msra.mxu0 %v41
    %197 = vmatprep.subr.mxu0 0.0
    %198 = vmatpush1.msra.mxu0 %v40
    %199 = vmatprep.subr.mxu0 0.0
    %200 = vmatpush1.msra.mxu0 %v39
    %201 = vmatprep.subr.mxu0 0.0
    %202 = vmatpush2.msra.mxu0 0.0
    %203 = vmatprep.subr.mxu0 0.0
    %204 = vmatpush2.msra.mxu0 0.0
    %205 = vmatprep.subr.mxu0 0.0
    %206 = vmatpush2.msra.mxu0 0.0
    %207 = vmatprep.subr.mxu0 0.0
    %208 = vmatpush2.msra.mxu0 0.0
    %209 = vmatprep.subr.mxu0 0.0
    %210 = vmatpush2.msra.mxu0 0.0
    %211 = vmatprep.subr.mxu0 0.0
    %212 = vmatpush2.msra.mxu0 0.0
    %213 = vmatprep.subr.mxu0 0.0
    %214 = vmatpush2.msra.mxu0 0.0
    %215 = vmatprep.subr.mxu0 0.0
    %216 = vmatpush2.msra.mxu0 0.0
    %217 = vmatprep.subr.mxu0 0.0
    %218 = vmatpush2.msra.mxu0 0.0
    %219 = vmatprep.subr.mxu0 0.0
    %220 = vmatpush2.msra.mxu0 0.0
    %221 = vmatprep.subr.mxu0 0.0
    %222 = vmatpush2.msra.mxu0 0.0
    %223 = vmatprep.subr.mxu0 0.0
    %224 = vmatpush2.msra.mxu0 0.0
    %225 = vmatprep.subr.mxu0 0.0
    %226 = vmatpush2.msra.mxu0 0.0
    %227 = vmatprep.subr.mxu0 0.0
    %228 = vmatpush2.msra.mxu0 0.0
    %229 = vmatprep.subr.mxu0 0.0
    %230 = vmatpush2.msra.mxu0 0.0
    %231 = vmatprep.subr.mxu0 0.0
    %232 = vmatpush2.msra.mxu0 0.0
    %233 = vmatprep.mubr.f32.mxu0 0.0
    %234 = vmatmul.mubr.f32.gmra.mxu0 %v164
    %v235 = vpop.f32.mrf.mxu0
    %v236 = vadd.f32 %v155, %v235
    %v237 = vpop.f32.mrf.mxu0
    %238 = vmatprep.mubr.f32.mxu0 0.0
    %239 = vmatmul.mubr.f32.gmra.mxu0 %v167
    %v240 = vpop.f32.mrf.mxu0
    %v241 = vadd.f32 %v160, %v240
    %v242 = vpop.f32.mrf.mxu0
    %243 = vdwg.mxu0
    %244 = vset.pattern.permute.xlu0 1
    %245 = vperm.xlu0 %244, %v23
    %v246 = vpop.permute.xlu0 %245
    %247 = vset.pattern.permute.xlu0 1
    %248 = vperm.xlu0 %247, %v24
    %v249 = vpop.permute.xlu0 %248
    %vm250 = vcmp.eq.s32.totalorder %v246, %v26
    %vm251 = vcmp.eq.s32.totalorder %v249, %v26
    %v252 = vsel %vm250, 1, 0
    %v253 = vsel %vm251, 1, 0
    %v254 = vcvt.s32.f32 %v252
    %v255 = vcvt.s32.f32 %v253
    %256 = vset.pattern.permute.xlu0 3
    %257 = vperm.xlu0 %256, %v23
    %v258 = vpop.permute.xlu0 %257
    %259 = vset.pattern.permute.xlu0 3
    %260 = vperm.xlu0 %259, %v24
    %v261 = vpop.permute.xlu0 %260
    %vm262 = vcmp.eq.s32.totalorder %v258, %v26
    %vm263 = vcmp.eq.s32.totalorder %v261, %v26
    %v264 = vsel %vm262, 1, 0
    %v265 = vsel %vm263, 1, 0
    %v266 = vcvt.s32.f32 %v264
    %v267 = vcvt.s32.f32 %v265
    %v268 = vadd.f32 %v254, %v266
    %v269 = vadd.f32 %v255, %v267
    %v270 = vld [vmem:[%s2 + $0x90] sm:$0xff]
    %v271 = vld [vmem:[%s2 + $0x98] sm:$0xff]
    %v272 = vld [vmem:[%s2 + $0xa0] sm:$0xff]
    %v273 = vld [vmem:[%s2 + $0xa8] sm:$0xff]
    %v274 = vld [vmem:[%s2 + $0xb0] sm:$0xff]
    %v275 = vld [vmem:[%s2 + $0xb8] sm:$0xff]
    %v276 = vld [vmem:[%s2 + $0xc0] sm:$0xff]
    %v277 = vld [vmem:[%s2 + $0xc8] sm:$0xff]
    %v279 = vsel %vm81, %v268, 0
    %v282 = vsel %vm81, %v269, 0
    %284 = vmatprep.subr.mxu0 0.0
    %285 = vmatpush1.msra.mxu0 0.0
    %286 = vmatprep.subr.mxu0 0.0
    %287 = vmatpush1.msra.mxu0 0.0
    %288 = vmatprep.subr.mxu0 0.0
    %289 = vmatpush1.msra.mxu0 0.0
    %290 = vmatprep.subr.mxu0 0.0
    %291 = vmatpush1.msra.mxu0 0.0
    %292 = vmatprep.subr.mxu0 0.0
    %293 = vmatpush1.msra.mxu0 0.0
    %294 = vmatprep.subr.mxu0 0.0
    %295 = vmatpush1.msra.mxu0 0.0
    %296 = vmatprep.subr.mxu0 0.0
    %297 = vmatpush1.msra.mxu0 0.0
    %298 = vmatprep.subr.mxu0 0.0
    %299 = vmatpush1.msra.mxu0 0.0
    %300 = vmatprep.subr.mxu0 0.0
    %301 = vmatpush1.msra.mxu0 %v277
    %302 = vmatprep.subr.mxu0 0.0
    %303 = vmatpush1.msra.mxu0 %v276
    %304 = vmatprep.subr.mxu0 0.0
    %305 = vmatpush1.msra.mxu0 %v275
    %306 = vmatprep.subr.mxu0 0.0
    %307 = vmatpush1.msra.mxu0 %v274
    %308 = vmatprep.subr.mxu0 0.0
    %309 = vmatpush1.msra.mxu0 %v273
    %310 = vmatprep.subr.mxu0 0.0
    %311 = vmatpush1.msra.mxu0 %v272
    %312 = vmatprep.subr.mxu0 0.0
    %313 = vmatpush1.msra.mxu0 %v271
    %314 = vmatprep.subr.mxu0 0.0
    %315 = vmatpush1.msra.mxu0 %v270
    %316 = vmatprep.subr.mxu0 0.0
    %317 = vmatpush2.msra.mxu0 0.0
    %318 = vmatprep.subr.mxu0 0.0
    %319 = vmatpush2.msra.mxu0 0.0
    %320 = vmatprep.subr.mxu0 0.0
    %321 = vmatpush2.msra.mxu0 0.0
    %322 = vmatprep.subr.mxu0 0.0
    %323 = vmatpush2.msra.mxu0 0.0
    %324 = vmatprep.subr.mxu0 0.0
    %325 = vmatpush2.msra.mxu0 0.0
    %326 = vmatprep.subr.mxu0 0.0
    %327 = vmatpush2.msra.mxu0 0.0
    %328 = vmatprep.subr.mxu0 0.0
    %329 = vmatpush2.msra.mxu0 0.0
    %330 = vmatprep.subr.mxu0 0.0
    %331 = vmatpush2.msra.mxu0 0.0
    %332 = vmatprep.subr.mxu0 0.0
    %333 = vmatpush2.msra.mxu0 0.0
    %334 = vmatprep.subr.mxu0 0.0
    %335 = vmatpush2.msra.mxu0 0.0
    %336 = vmatprep.subr.mxu0 0.0
    %337 = vmatpush2.msra.mxu0 0.0
    %338 = vmatprep.subr.mxu0 0.0
    %339 = vmatpush2.msra.mxu0 0.0
    %340 = vmatprep.subr.mxu0 0.0
    %341 = vmatpush2.msra.mxu0 0.0
    %342 = vmatprep.subr.mxu0 0.0
    %343 = vmatpush2.msra.mxu0 0.0
    %344 = vmatprep.subr.mxu0 0.0
    %345 = vmatpush2.msra.mxu0 0.0
    %346 = vmatprep.subr.mxu0 0.0
    %347 = vmatpush2.msra.mxu0 0.0
    %348 = vmatprep.mubr.f32.mxu0 0.0
    %349 = vmatmul.mubr.f32.gmra.mxu0 %v279
    %v350 = vpop.f32.mrf.mxu0
    %v351 = vadd.f32 0.0, %v350
    %v352 = vpop.f32.mrf.mxu0
    %353 = vmatprep.mubr.f32.mxu0 0.0
    %354 = vmatmul.mubr.f32.gmra.mxu0 %v282
    %v355 = vpop.f32.mrf.mxu0
    %v356 = vadd.f32 0.0, %v355
    %v357 = vpop.f32.mrf.mxu0
    %358 = vdwg.mxu0
    %v359 = vadd.f32 %v236, %v351
    %v360 = vadd.f32 %v241, %v356
    %361 = vrot.lane.b32.xlu0 %v23, 2
    %v362 = vpop.permute.xlu0 %361
    %363 = vrot.lane.b32.xlu0 %v24, 2
    %v364 = vpop.permute.xlu0 %363
    %v365 = vsub.s32 %v23, %v362
    %v366 = vsub.s32 %v24, %v364
    %367 = vset.pattern.permute.xlu0 3
    %368 = vperm.xlu0 %367, %v365
    %v369 = vpop.permute.xlu0 %368
    %370 = vset.pattern.permute.xlu0 3
    %371 = vperm.xlu0 %370, %v366
    %v372 = vpop.permute.xlu0 %371
    %vm373 = vcmp.eq.s32.totalorder %v369, %v26
    %vm374 = vcmp.eq.s32.totalorder %v372, %v26
    %v375 = vsel %vm373, 1, 0
    %v376 = vsel %vm374, 1, 0
    %v377 = vcvt.s32.f32 %v375
    %v378 = vcvt.s32.f32 %v376
    %v379 = vld [vmem:[%s2 + $0xd0] sm:$0xff]
    %v380 = vld [vmem:[%s2 + $0xd8] sm:$0xff]
    %v381 = vld [vmem:[%s2 + $0xe0] sm:$0xff]
    %v382 = vld [vmem:[%s2 + $0xe8] sm:$0xff]
    %v383 = vld [vmem:[%s2 + $0xf0] sm:$0xff]
    %v384 = vld [vmem:[%s2 + $0xf8] sm:$0xff]
    %v385 = vld [vmem:[%s2 + $0x100] sm:$0xff]
    %v386 = vld [vmem:[%s2 + $0x108] sm:$0xff]
    %v388 = vsel %vm81, %v377, 0
    %v391 = vsel %vm81, %v378, 0
    %393 = vmatprep.subr.mxu0 0.0
    %394 = vmatpush1.msra.mxu0 0.0
    %395 = vmatprep.subr.mxu0 0.0
    %396 = vmatpush1.msra.mxu0 0.0
    %397 = vmatprep.subr.mxu0 0.0
    %398 = vmatpush1.msra.mxu0 0.0
    %399 = vmatprep.subr.mxu0 0.0
    %400 = vmatpush1.msra.mxu0 0.0
    %401 = vmatprep.subr.mxu0 0.0
    %402 = vmatpush1.msra.mxu0 0.0
    %403 = vmatprep.subr.mxu0 0.0
    %404 = vmatpush1.msra.mxu0 0.0
    %405 = vmatprep.subr.mxu0 0.0
    %406 = vmatpush1.msra.mxu0 0.0
    %407 = vmatprep.subr.mxu0 0.0
    %408 = vmatpush1.msra.mxu0 0.0
    %409 = vmatprep.subr.mxu0 0.0
    %410 = vmatpush1.msra.mxu0 %v386
    %411 = vmatprep.subr.mxu0 0.0
    %412 = vmatpush1.msra.mxu0 %v385
    %413 = vmatprep.subr.mxu0 0.0
    %414 = vmatpush1.msra.mxu0 %v384
    %415 = vmatprep.subr.mxu0 0.0
    %416 = vmatpush1.msra.mxu0 %v383
    %417 = vmatprep.subr.mxu0 0.0
    %418 = vmatpush1.msra.mxu0 %v382
    %419 = vmatprep.subr.mxu0 0.0
    %420 = vmatpush1.msra.mxu0 %v381
    %421 = vmatprep.subr.mxu0 0.0
    %422 = vmatpush1.msra.mxu0 %v380
    %423 = vmatprep.subr.mxu0 0.0
    %424 = vmatpush1.msra.mxu0 %v379
    %425 = vmatprep.subr.mxu0 0.0
    %426 = vmatpush2.msra.mxu0 0.0
    %427 = vmatprep.subr.mxu0 0.0
    %428 = vmatpush2.msra.mxu0 0.0
    %429 = vmatprep.subr.mxu0 0.0
    %430 = vmatpush2.msra.mxu0 0.0
    %431 = vmatprep.subr.mxu0 0.0
    %432 = vmatpush2.msra.mxu0 0.0
    %433 = vmatprep.subr.mxu0 0.0
    %434 = vmatpush2.msra.mxu0 0.0
    %435 = vmatprep.subr.mxu0 0.0
    %436 = vmatpush2.msra.mxu0 0.0
    %437 = vmatprep.subr.mxu0 0.0
    %438 = vmatpush2.msra.mxu0 0.0
    %439 = vmatprep.subr.mxu0 0.0
    %440 = vmatpush2.msra.mxu0 0.0
    %441 = vmatprep.subr.mxu0 0.0
    %442 = vmatpush2.msra.mxu0 0.0
    %443 = vmatprep.subr.mxu0 0.0
    %444 = vmatpush2.msra.mxu0 0.0
    %445 = vmatprep.subr.mxu0 0.0
    %446 = vmatpush2.msra.mxu0 0.0
    %447 = vmatprep.subr.mxu0 0.0
    %448 = vmatpush2.msra.mxu0 0.0
    %449 = vmatprep.subr.mxu0 0.0
    %450 = vmatpush2.msra.mxu0 0.0
    %451 = vmatprep.subr.mxu0 0.0
    %452 = vmatpush2.msra.mxu0 0.0
    %453 = vmatprep.subr.mxu0 0.0
    %454 = vmatpush2.msra.mxu0 0.0
    %455 = vmatprep.subr.mxu0 0.0
    %456 = vmatpush2.msra.mxu0 0.0
    %457 = vmatprep.mubr.f32.mxu0 0.0
    %458 = vmatmul.mubr.f32.gmra.mxu0 %v388
    %v459 = vpop.f32.mrf.mxu0
    %v460 = vadd.f32 0.0, %v459
    %v461 = vpop.f32.mrf.mxu0
    %462 = vmatprep.mubr.f32.mxu0 0.0
    %463 = vmatmul.mubr.f32.gmra.mxu0 %v391
    %v464 = vpop.f32.mrf.mxu0
    %v465 = vadd.f32 0.0, %v464
    %v466 = vpop.f32.mrf.mxu0
    %467 = vdwg.mxu0
    %v468 = vadd.f32 %v359, %v460
    %v469 = vadd.f32 %v360, %v465
    %470 = vset.pattern.permute.xlu0 2
    %471 = vperm.xlu0 %470, %v365
    %v472 = vpop.permute.xlu0 %471
    %473 = vset.pattern.permute.xlu0 2
    %474 = vperm.xlu0 %473, %v366
    %v475 = vpop.permute.xlu0 %474
    %vm476 = vcmp.eq.s32.totalorder %v472, %v26
    %vm477 = vcmp.eq.s32.totalorder %v475, %v26
    %v478 = vsel %vm476, 1, 0
    %v479 = vsel %vm477, 1, 0
    %v480 = vcvt.s32.f32 %v478
    %v481 = vcvt.s32.f32 %v479
    %v482 = vld [vmem:[%s2 + $0x110] sm:$0xff]
    %v483 = vld [vmem:[%s2 + $0x118] sm:$0xff]
    %v484 = vld [vmem:[%s2 + $0x120] sm:$0xff]
    %v485 = vld [vmem:[%s2 + $0x128] sm:$0xff]
    %v486 = vld [vmem:[%s2 + $0x130] sm:$0xff]
    %v487 = vld [vmem:[%s2 + $0x138] sm:$0xff]
    %v488 = vld [vmem:[%s2 + $0x140] sm:$0xff]
    %v489 = vld [vmem:[%s2 + $0x148] sm:$0xff]
    %v491 = vsel %vm81, %v480, 0
    %v494 = vsel %vm81, %v481, 0
    %496 = vmatprep.subr.mxu0 0.0
    %497 = vmatpush1.msra.mxu0 0.0
    %498 = vmatprep.subr.mxu0 0.0
    %499 = vmatpush1.msra.mxu0 0.0
    %500 = vmatprep.subr.mxu0 0.0
    %501 = vmatpush1.msra.mxu0 0.0
    %502 = vmatprep.subr.mxu0 0.0
    %503 = vmatpush1.msra.mxu0 0.0
    %504 = vmatprep.subr.mxu0 0.0
    %505 = vmatpush1.msra.mxu0 0.0
    %506 = vmatprep.subr.mxu0 0.0
    %507 = vmatpush1.msra.mxu0 0.0
    %508 = vmatprep.subr.mxu0 0.0
    %509 = vmatpush1.msra.mxu0 0.0
    %510 = vmatprep.subr.mxu0 0.0
    %511 = vmatpush1.msra.mxu0 0.0
    %512 = vmatprep.subr.mxu0 0.0
    %513 = vmatpush1.msra.mxu0 %v489
    %514 = vmatprep.subr.mxu0 0.0
    %515 = vmatpush1.msra.mxu0 %v488
    %516 = vmatprep.subr.mxu0 0.0
    %517 = vmatpush1.msra.mxu0 %v487
    %518 = vmatprep.subr.mxu0 0.0
    %519 = vmatpush1.msra.mxu0 %v486
    %520 = vmatprep.subr.mxu0 0.0
    %521 = vmatpush1.msra.mxu0 %v485
    %522 = vmatprep.subr.mxu0 0.0
    %523 = vmatpush1.msra.mxu0 %v484
    %524 = vmatprep.subr.mxu0 0.0
    %525 = vmatpush1.msra.mxu0 %v483
    %526 = vmatprep.subr.mxu0 0.0
    %527 = vmatpush1.msra.mxu0 %v482
    %528 = vmatprep.subr.mxu0 0.0
    %529 = vmatpush2.msra.mxu0 0.0
    %530 = vmatprep.subr.mxu0 0.0
    %531 = vmatpush2.msra.mxu0 0.0
    %532 = vmatprep.subr.mxu0 0.0
    %533 = vmatpush2.msra.mxu0 0.0
    %534 = vmatprep.subr.mxu0 0.0
    %535 = vmatpush2.msra.mxu0 0.0
    %536 = vmatprep.subr.mxu0 0.0
    %537 = vmatpush2.msra.mxu0 0.0
    %538 = vmatprep.subr.mxu0 0.0
    %539 = vmatpush2.msra.mxu0 0.0
    %540 = vmatprep.subr.mxu0 0.0
    %541 = vmatpush2.msra.mxu0 0.0
    %542 = vmatprep.subr.mxu0 0.0
    %543 = vmatpush2.msra.mxu0 0.0
    %544 = vmatprep.subr.mxu0 0.0
    %545 = vmatpush2.msra.mxu0 0.0
    %546 = vmatprep.subr.mxu0 0.0
    %547 = vmatpush2.msra.mxu0 0.0
    %548 = vmatprep.subr.mxu0 0.0
    %549 = vmatpush2.msra.mxu0 0.0
    %550 = vmatprep.subr.mxu0 0.0
    %551 = vmatpush2.msra.mxu0 0.0
    %552 = vmatprep.subr.mxu0 0.0
    %553 = vmatpush2.msra.mxu0 0.0
    %554 = vmatprep.subr.mxu0 0.0
    %555 = vmatpush2.msra.mxu0 0.0
    %556 = vmatprep.subr.mxu0 0.0
    %557 = vmatpush2.msra.mxu0 0.0
    %558 = vmatprep.subr.mxu0 0.0
    %559 = vmatpush2.msra.mxu0 0.0
    %560 = vmatprep.mubr.f32.mxu0 0.0
    %561 = vmatmul.mubr.f32.gmra.mxu0 %v491
    %v562 = vpop.f32.mrf.mxu0
    %v563 = vadd.f32 0.0, %v562
    %v564 = vpop.f32.mrf.mxu0
    %565 = vmatprep.mubr.f32.mxu0 0.0
    %566 = vmatmul.mubr.f32.gmra.mxu0 %v494
    %v567 = vpop.f32.mrf.mxu0
    %v568 = vadd.f32 0.0, %v567
    %v569 = vpop.f32.mrf.mxu0
    %570 = vdwg.mxu0
    %v571 = vadd.f32 %v468, %v563
    %v572 = vadd.f32 %v469, %v568
    %v573 = vld [vmem:[%s2 + $0x40] sm:$0xff]
    %v574 = vadd.f32 %v571, %v573
    %v575 = vadd.f32 %v572, %v573
    %v576 = vld [vmem:[%s2 + $0x150] sm:$0x1]
    %v577 = vlaneseq
    %v578 = vshrl.u32 %v577, 7
    %v579 = vsub.s32 0, %v578
    %v580 = vrot.slane %v576, %v579
    %v581 = vadd.f32 %v574, %v580
    %v582 = vadd.f32 %v575, %v580
    %vm583 = vcmask 261120
    %v584 = vsel %vm583, %v581, 0.0
    %585 = vadd.xlane.f32.xlu0 %v584
    %v586 = vpop.xlane.xlu0 %585
    %v587 = vsel %vm583, %v582, 0.0
    %588 = vadd.xlane.f32.xlu0 %v587
    %v589 = vpop.xlane.xlu0 %588
    %v590 = vmul.f32 %v586, 0.03125
    %v591 = vmul.f32 %v589, 0.03125
    %v592 = vsub.f32 %v581, %v590
    %v593 = vsub.f32 %v582, %v591
    %v594 = vmul.f32 %v592, %v592
    %v595 = vmul.f32 %v593, %v593
    %v596 = vsel %vm583, %v594, 0.0
    %597 = vadd.xlane.f32.xlu0 %v596
    %v598 = vpop.xlane.xlu0 %597
    %v599 = vsel %vm583, %v595, 0.0
    %600 = vadd.xlane.f32.xlu0 %v599
    %v601 = vpop.xlane.xlu0 %600
    %v602 = vmul.f32 %v598, 0.03125
    %v603 = vmul.f32 %v601, 0.03125
    %v604 = vadd.f32 %v602, 1e-12
    %v605 = vadd.f32 %v603, 1e-12
    %v606 = vrsqrt.pop %v604
    %v607 = vrsqrt.pop %v605
    %v608 = vmul.f32 %v592, %v606
    %v609 = vmul.f32 %v593, %v607
    %v610 = vld [vmem:[%s3] sm:$0x1]
    %v612 = vlaneseq
    %v613 = vshrl.u32 %v612, 7
    %v614 = vsub.s32 0, %v613
    %v615 = vrot.slane %v610, %v614
    %v617 = vmul.f32 %v608, %v615
    %v618 = vmul.f32 %v609, %v615
    %v619 = vld [vmem:[%s4] sm:$0x1]
    %v621 = vlaneseq
    %v622 = vshrl.u32 %v621, 7
    %v623 = vsub.s32 0, %v622
    %v624 = vrot.slane %v619, %v623
    %v626 = vadd.f32 %v617, %v624
    %v627 = vadd.f32 %v618, %v624
    %628 = vst.msk [vmem:[#allocation2] sm:$0xff] %vm583, %v626
    %629 = vst.msk [vmem:[#allocation2 + $0x8] sm:$0xff] %vm583, %v627
    // Predicated region
    $region22: #{layoutlm_embeddings.1} parent=1 // pred_check
      _
    $region23: #{layoutlm_embeddings.1} parent=1 // pred_check_branch
      %631 = sbr.rel (0) target = $region25
    $region24: #{layoutlm_embeddings.1} parent=1 // pred_region
      %s633 = ssub.s32 256, 256
      %634 = vsyncadd [#allocation3], %s633
      %s635 = sshll.u32 [#allocation2], 4
      %s636 = int_to_ptr.vmem [resolvable:$true] %s635
      %641 = dma.vmem_to_hbm [thread:$0]  %s636, 256, %s5, [#allocation3], 128, 128, 8
    $region25: #{layoutlm_embeddings.1} parent=1 // pred_fallthru
      _
    // Predicated region
    $region26: #{layoutlm_embeddings.1} parent=1 // pred_check
      _
    $region27: #{layoutlm_embeddings.1} parent=1 // pred_check_branch
      %643 = sbr.rel (0) target = $region29
    $region28: #{layoutlm_embeddings.1} parent=1 // pred_region
      %644 = dma.done [#allocation3], 256
    $region29: #{layoutlm_embeddings.1} parent=1 // pred_fallthru
      _
    %645 = vsyncpa [#allocation3], 1

</llo_original>
